<compile_context>
chip_gen: v7x
topology: tpu7x:2x2x1
jax: 0.10.0
libtpu: 0.0.40
codegen_flags: <defaults>
</compile_context>

<pallas_src>
import functools

import jax
import jax.numpy as jnp
from jax.experimental import pallas as pl
from jax.experimental.pallas import tpu as pltpu


def _round_up(x, m):
    return ((x + m - 1) // m) * m


def _vmem_capacity_bytes():
    try:
        cap = getattr(pltpu.get_tpu_info(), "vmem_capacity_bytes", None)
        if cap:
            return int(cap)
    except Exception:
        pass
    return None


def _vmem_limit_bytes():
    # ~80% of per-core VMEM (leaves headroom for compiler scratch / tiles).
    # Fallback 48 MiB is safe on all of v5e / v6e / v7x.
    cap = _vmem_capacity_bytes()
    if cap:
        return int(cap * 0.8)
    return 48 * 1024 * 1024


def _default_tm():
    # 512 token rows on 128-MiB-VMEM chips (v5e/v6e); 256 on v7x (64 MiB/TC).
    cap = _vmem_capacity_bytes()
    if cap and cap <= 64 * 1024 * 1024:
        return 256
    return 512


def _choose_tile(M, tm):
    """Token tile: multiple of 16 (bf16 (16,128) min tile); prefer >= 2 grid
    steps when there is enough work so v7x's two TensorCores are both used."""
    Mr = _round_up(max(M, 1), 16)
    if Mr <= tm:
        if Mr >= 512:
            tm_eff = _round_up((Mr + 1) // 2, 256)
        else:
            tm_eff = Mr
    else:
        tm_eff = tm
    return tm_eff, _round_up(M, tm_eff)


def _sparse_mlp_kernel(x_ref, w1_ref, b1_ref, w2_ref, b2_ref, o_ref, *,
                       approximate):
    # fc1 on the MXU: (TM, Din) @ (Din, H), bf16 operands, f32 accumulation.
    h = jnp.dot(x_ref[...], w1_ref[...], preferred_element_type=jnp.float32)
    h = h + b1_ref[...]                      # f32 bias, broadcast over rows
    # GELU in the compute dtype; approximate=True routes the transcendental to
    # the EUP (tanh) and halves the intermediate vs the f32 erf polynomial.
    h = jax.nn.gelu(h.astype(w2_ref.dtype), approximate=approximate)
    # fc2 on the MXU.  zeta_node (hidden gate) and sigmoid(zeta_layer) (layer
    # gate) are pre-folded into w2/b2 at parameter-prep time.
    y = jnp.dot(h, w2_ref[...], preferred_element_type=jnp.float32)
    y = y + b2_ref[...]
    o_ref[...] = y.astype(o_ref.dtype)


def prepare_sparse_mlp_params(w1, b1, w2, b2, zeta_node=None, layer_scale=1.0,
                              compute_dtype=jnp.bfloat16):
    """One-time parameter prep: fold the gates into fc2 (in f32, before any
    bf16 rounding), pad feature dims to multiples of 128 (lane-dense), cast
    weights to compute_dtype.  Call once; reuse the dict across forwards."""
    Din, H = w1.shape
    Dout = w2.shape[1]

    ls = jnp.asarray(layer_scale, jnp.float32)
    zn = (jnp.ones((H,), jnp.float32) if zeta_node is None
          else jnp.asarray(zeta_node, jnp.float32)).reshape(H, 1)
    w2_eff = zn * w2.astype(jnp.float32) * ls
    b2_eff = b2.astype(jnp.float32).reshape(1, Dout) * ls

    Din_p, H_p, Dout_p = (_round_up(d, 128) for d in (Din, H, Dout))
    w1_p = jnp.zeros((Din_p, H_p), compute_dtype).at[:Din, :H].set(
        w1.astype(compute_dtype))
    b1_p = jnp.zeros((1, H_p), jnp.float32).at[:, :H].set(
        b1.reshape(1, H).astype(jnp.float32))
    w2_p = jnp.zeros((H_p, Dout_p), compute_dtype).at[:H, :Dout].set(
        w2_eff.astype(compute_dtype))
    b2_p = jnp.zeros((1, Dout_p), jnp.float32).at[:, :Dout].set(b2_eff)

    return {"w1": w1_p, "b1": b1_p, "w2": w2_p, "b2": b2_p,
            "dims": (Din, H, Dout), "compute_dtype": compute_dtype}


def sparse_mlp_forward(x, params, *, tm=None, out_dtype=None,
                       gelu_approximate=True):
    """x: (B, N, Din).  params: output of prepare_sparse_mlp_params.

    Returns (B, N, Dout) in `out_dtype` (default: x.dtype; pass jnp.bfloat16
    when the downstream consumer accepts it to halve writeback traffic).
    """
    Din, H, Dout = params["dims"]
    cd = params["compute_dtype"]
    w1_p, b1_p, w2_p, b2_p = (params[k] for k in ("w1", "b1", "w2", "b2"))
    Din_p, H_p = w1_p.shape
    Dout_p = w2_p.shape[1]

    B, N, Din_x = x.shape
    assert Din_x == Din, (Din_x, Din)
    M = B * N
    out_dtype = x.dtype if out_dtype is None else out_dtype
    tm = _default_tm() if tm is None else tm
    tm_eff, M_p = _choose_tile(M, tm)

    # Activation: skip the pad entirely when already tile-aligned (typical
    # ViT dims 768/1024/3072 and batch*seq multiples of the tile are).
    x2 = x.reshape(M, Din)
    if M_p == M and Din_p == Din:
        x2 = x2.astype(cd)
    else:
        xp = jnp.zeros((M_p, Din_p), cd)
        x2 = xp.at[:M, :Din].set(x2.astype(cd))

    grid = (M_p // tm_eff,)
    cost = pl.CostEstimate(
        flops=2 * M_p * Din_p * H_p + 2 * M_p * H_p * Dout_p,
        transcendentals=M_p * H_p,
        bytes_accessed=(x2.size * x2.dtype.itemsize
                        + w1_p.size * w1_p.dtype.itemsize
                        + w2_p.size * w2_p.dtype.itemsize
                        + (b1_p.size + b2_p.size) * 4
                        + M_p * Dout_p * jnp.dtype(out_dtype).itemsize))

    kernel = functools.partial(_sparse_mlp_kernel,
                               approximate=gelu_approximate)

    def _run(single_buffer_weights):
        if single_buffer_weights:
            def const_spec(shape):
                return pl.BlockSpec(shape, lambda i: (0, 0),
                                    pipeline_mode=pl.Buffered(1))
        else:
            def const_spec(shape):
                return pl.BlockSpec(shape, lambda i: (0, 0))
        return pl.pallas_call(
            kernel,
            out_shape=jax.ShapeDtypeStruct((M_p, Dout_p), out_dtype),
            grid=grid,
            in_specs=[
                pl.BlockSpec((tm_eff, Din_p), lambda i: (i, 0)),  # x (streamed)
                const_spec((Din_p, H_p)),                          # W1 (resident)
                const_spec((1, H_p)),                              # b1 (resident)
                const_spec((H_p, Dout_p)),                         # W2' (gates folded)
                const_spec((1, Dout_p)),                           # b2' (gates folded)
            ],
            out_specs=pl.BlockSpec((tm_eff, Dout_p), lambda i: (i, 0)),
            compiler_params=pltpu.CompilerParams(
                dimension_semantics=("parallel",),
                vmem_limit_bytes=_vmem_limit_bytes()),
            cost_estimate=cost,
        )(x2, w1_p, b1_p, w2_p, b2_p)

    try:
        out = _run(single_buffer_weights=True)
    except Exception:
        # Fallback for jax versions without pipeline_mode / Buffered support.
        out = _run(single_buffer_weights=False)

    if M_p != M or Dout_p != Dout:
        out = out[:M, :Dout]
    return out.reshape(B, N, Dout)


def reference_forward(x, w1, b1, w2, b2, zeta_node, layer_scale):
    # Pure-f32, exact-erf reference == torch SparseMlp eval-mode semantics.
    h = jnp.einsum("bnd,dh->bnh", x, w1) + b1
    h = jax.nn.gelu(h, approximate=False)
    h = h * zeta_node.reshape(1, 1, -1)
    y = jnp.einsum("bnh,ho->bno", h, w2) + b2
    return y * layer_scale


if __name__ == "__main__":
    # Small, Mlp-consistent shapes: batch=2, seq=8, in=32, hidden=64, out=32.
    B, N, Din, H, Dout = 2, 8, 32, 64, 32
    _prune_node = True
    _prune_layer = True
    _prune_activation = True

    key = jax.random.PRNGKey(0)
    kx, k1, k2, k3, k4, kz, kl = jax.random.split(key, 7)

    # nn.Linear-style deterministic init: U(-1/sqrt(fan_in), 1/sqrt(fan_in)).
    lim1 = 1.0 / (Din ** 0.5)
    lim2 = 1.0 / (H ** 0.5)
    w1 = jax.random.uniform(k1, (Din, H), jnp.float32, -lim1, lim1)   # fc1.weight.T
    b1 = jax.random.uniform(k2, (H,), jnp.float32, -lim1, lim1)
    w2 = jax.random.uniform(k3, (H, Dout), jnp.float32, -lim2, lim2)  # fc2.weight.T
    b2 = jax.random.uniform(k4, (Dout,), jnp.float32, -lim2, lim2)

    # zeta parameters (init to ones in the module; perturb slightly so the
    # gating path is actually exercised).
    zeta_node = jnp.ones((H,), jnp.float32) + 0.01 * jax.random.normal(kz, (H,))
    zeta_layer = jnp.ones((), jnp.float32) + 0.01 * jax.random.normal(kl, ())

    if not _prune_node:
        zeta_node = jnp.ones((H,), jnp.float32)
    if _prune_layer and _prune_activation:
        layer_scale = jax.nn.sigmoid(zeta_layer)
    elif _prune_layer:
        layer_scale = zeta_layer
    else:
        layer_scale = jnp.float32(1.0)

    x = jax.random.normal(kx, (B, N, Din), jnp.float32)

    # One-time parameter prep (gate folding + padding + bf16 cast), then the
    # fused forward.
    params = prepare_sparse_mlp_params(w1, b1, w2, b2, zeta_node, layer_scale)
    out = sparse_mlp_forward(x, params)
    out = jax.block_until_ready(out)

    ref = reference_forward(x, w1, b1, w2, b2, zeta_node, layer_scale)
    assert out.shape == (B, N, Dout)

    # bf16 matmul inputs with f32 accumulation + tanh-approximate GELU vs the
    # pure-f32 exact-erf reference -> loosened tolerance.
    max_abs = float(jnp.max(jnp.abs(out - ref)))
    rel = float(jnp.linalg.norm(out - ref) / (jnp.linalg.norm(ref) + 1e-12))
    assert max_abs < 2e-1 and rel < 4e-2, (
        f"mismatch vs reference: max_abs={max_abs:.3e} rel={rel:.3e}")

    print("KERNEL_OK")
</pallas_src>

<mosaic_0001>
module attributes {stable_mosaic.version = 11 : i64} {
  func.func @_sparse_mlp_kernel(%arg0: i32, %arg1: memref<16x128xbf16, #tpu.memory_space<vmem>>, %arg2: memref<128x128xbf16, #tpu.memory_space<vmem>>, %arg3: memref<1x128xf32, #tpu.memory_space<vmem>>, %arg4: memref<128x128xbf16, #tpu.memory_space<vmem>>, %arg5: memref<1x128xf32, #tpu.memory_space<vmem>>, %arg6: memref<16x128xf32, #tpu.memory_space<vmem>>) attributes {dimension_semantics = [#tpu.dimension_semantics<parallel>], iteration_bounds = array<i64: 1>, scalar_prefetch = 0 : i64, scratch_operands = 0 : i64, tpu.core_type = #tpu.core_type<tc>, window_params = [{transform_indices = @transform_0, window_bounds = array<i64: 16, 128>}, {pipeline_mode = #tpu.pipeline_mode<synchronous>, transform_indices = @transform_1, window_bounds = array<i64: 128, 128>}, {pipeline_mode = #tpu.pipeline_mode<synchronous>, transform_indices = @transform_2, window_bounds = array<i64: 1, 128>}, {pipeline_mode = #tpu.pipeline_mode<synchronous>, transform_indices = @transform_3, window_bounds = array<i64: 128, 128>}, {pipeline_mode = #tpu.pipeline_mode<synchronous>, transform_indices = @transform_4, window_bounds = array<i64: 1, 128>}, {transform_indices = @transform_5, window_bounds = array<i64: 16, 128>}]} {
    %c0 = arith.constant 0 : index
    %c0_0 = arith.constant 0 : index
    %0 = vector.load %arg1[%c0, %c0_0] : memref<16x128xbf16, #tpu.memory_space<vmem>>, vector<16x128xbf16>
    %c0_1 = arith.constant 0 : index
    %c0_2 = arith.constant 0 : index
    %1 = vector.load %arg2[%c0_1, %c0_2] : memref<128x128xbf16, #tpu.memory_space<vmem>>, vector<128x128xbf16>
    %cst = arith.constant dense<0.000000e+00> : vector<16x128xf32>
    %2 = tpu.matmul %0, %1, %cst {dimension_numbers = #tpu.dot_dimension_numbers<[1], [0], [0], [1], [0, 0, 1, 1], [], []>} : vector<16x128xbf16>, vector<128x128xbf16>, vector<16x128xf32> -> vector<16x128xf32>
    %c0_3 = arith.constant 0 : index
    %c0_4 = arith.constant 0 : index
    %3 = vector.load %arg3[%c0_3, %c0_4] : memref<1x128xf32, #tpu.memory_space<vmem>>, vector<1x128xf32>
    %4 = vector.broadcast %3 : vector<1x128xf32> to vector<16x128xf32>
    %5 = arith.addf %2, %4 : vector<16x128xf32>
    %6 = arith.truncf %5 : vector<16x128xf32> to vector<16x128xbf16>
    %7 = arith.mulf %6, %6 : vector<16x128xbf16>
    %8 = arith.mulf %6, %7 : vector<16x128xbf16>
    %cst_5 = arith.constant 4.467770e-02 : bf16
    %9 = vector.broadcast %cst_5 : bf16 to vector<16x128xbf16>
    %10 = arith.mulf %9, %8 : vector<16x128xbf16>
    %11 = arith.addf %6, %10 : vector<16x128xbf16>
    %cst_6 = arith.constant 7.968750e-01 : bf16
    %12 = vector.broadcast %cst_6 : bf16 to vector<16x128xbf16>
    %13 = arith.mulf %12, %11 : vector<16x128xbf16>
    %14 = math.tanh %13 : vector<16x128xbf16>
    %cst_7 = arith.constant 1.000000e+00 : bf16
    %15 = vector.broadcast %cst_7 : bf16 to vector<16x128xbf16>
    %16 = arith.addf %15, %14 : vector<16x128xbf16>
    %cst_8 = arith.constant 5.000000e-01 : bf16
    %17 = vector.broadcast %cst_8 : bf16 to vector<16x128xbf16>
    %18 = arith.mulf %17, %16 : vector<16x128xbf16>
    %19 = arith.mulf %6, %18 : vector<16x128xbf16>
    %c0_9 = arith.constant 0 : index
    %c0_10 = arith.constant 0 : index
    %20 = vector.load %arg4[%c0_9, %c0_10] : memref<128x128xbf16, #tpu.memory_space<vmem>>, vector<128x128xbf16>
    %cst_11 = arith.constant dense<0.000000e+00> : vector<16x128xf32>
    %21 = tpu.matmul %19, %20, %cst_11 {dimension_numbers = #tpu.dot_dimension_numbers<[1], [0], [0], [1], [0, 0, 1, 1], [], []>} : vector<16x128xbf16>, vector<128x128xbf16>, vector<16x128xf32> -> vector<16x128xf32>
    %c0_12 = arith.constant 0 : index
    %c0_13 = arith.constant 0 : index
    %22 = vector.load %arg5[%c0_12, %c0_13] : memref<1x128xf32, #tpu.memory_space<vmem>>, vector<1x128xf32>
    %23 = vector.broadcast %22 : vector<1x128xf32> to vector<16x128xf32>
    %24 = arith.addf %21, %23 : vector<16x128xf32>
    %c0_14 = arith.constant 0 : index
    %c0_15 = arith.constant 0 : index
    %25 = vector.load %arg6[%c0_14, %c0_15] : memref<16x128xf32, #tpu.memory_space<vmem>>, vector<16x128xf32>
    tpu.vector_store %arg6[%c0_14, %c0_15], %24 {strides = array<i32>} : memref<16x128xf32, #tpu.memory_space<vmem>>, vector<16x128xf32>,
    return
  }
  func.func @transform_0(%arg0: i32) -> (i32, i32) {
    %c0_i32 = arith.constant 0 : i32
    %c0_i32_0 = arith.constant 0 : i32
    return %arg0, %c0_i32 : i32, i32
  }
  func.func @transform_1(%arg0: i32) -> (i32, i32) {
    %c0_i32 = arith.constant 0 : i32
    %c0_i32_0 = arith.constant 0 : i32
    %c0_i32_1 = arith.constant 0 : i32
    return %c0_i32, %c0_i32_0 : i32, i32
  }
  func.func @transform_2(%arg0: i32) -> (i32, i32) {
    %c0_i32 = arith.constant 0 : i32
    %c0_i32_0 = arith.constant 0 : i32
    %c0_i32_1 = arith.constant 0 : i32
    return %c0_i32, %c0_i32_0 : i32, i32
  }
  func.func @transform_3(%arg0: i32) -> (i32, i32) {
    %c0_i32 = arith.constant 0 : i32
    %c0_i32_0 = arith.constant 0 : i32
    %c0_i32_1 = arith.constant 0 : i32
    return %c0_i32, %c0_i32_0 : i32, i32
  }
  func.func @transform_4(%arg0: i32) -> (i32, i32) {
    %c0_i32 = arith.constant 0 : i32
    %c0_i32_0 = arith.constant 0 : i32
    %c0_i32_1 = arith.constant 0 : i32
    return %c0_i32, %c0_i32_0 : i32, i32
  }
  func.func @transform_5(%arg0: i32) -> (i32, i32) {
    %c0_i32 = arith.constant 0 : i32
    %c0_i32_0 = arith.constant 0 : i32
    return %arg0, %c0_i32 : i32, i32
  }
}

module attributes {stable_mosaic.version = 11 : i64} {
  func.func @_sparse_mlp_kernel(%arg0: i32, %arg1: memref<16x128xbf16, #tpu.memory_space<vmem>>, %arg2: memref<128x128xbf16, #tpu.memory_space<vmem>>, %arg3: memref<1x128xf32, #tpu.memory_space<vmem>>, %arg4: memref<128x128xbf16, #tpu.memory_space<vmem>>, %arg5: memref<1x128xf32, #tpu.memory_space<vmem>>, %arg6: memref<16x128xf32, #tpu.memory_space<vmem>>) attributes {dimension_semantics = [#tpu.dimension_semantics<parallel>], iteration_bounds = array<i64: 1>, scalar_prefetch = 0 : i64, scratch_operands = 0 : i64, tpu.core_type = #tpu.core_type<tc>, window_params = [{transform_indices = @transform_0, window_bounds = array<i64: 16, 128>}, {pipeline_mode = #tpu.pipeline_mode<synchronous>, transform_indices = @transform_1, window_bounds = array<i64: 128, 128>}, {pipeline_mode = #tpu.pipeline_mode<synchronous>, transform_indices = @transform_2, window_bounds = array<i64: 1, 128>}, {pipeline_mode = #tpu.pipeline_mode<synchronous>, transform_indices = @transform_3, window_bounds = array<i64: 128, 128>}, {pipeline_mode = #tpu.pipeline_mode<synchronous>, transform_indices = @transform_4, window_bounds = array<i64: 1, 128>}, {transform_indices = @transform_5, window_bounds = array<i64: 16, 128>}]} {
    %c0 = arith.constant 0 : index
    %c0_0 = arith.constant 0 : index
    %0 = vector.load %arg1[%c0, %c0_0] : memref<16x128xbf16, #tpu.memory_space<vmem>>, vector<16x128xbf16>
    %c0_1 = arith.constant 0 : index
    %c0_2 = arith.constant 0 : index
    %1 = vector.load %arg2[%c0_1, %c0_2] : memref<128x128xbf16, #tpu.memory_space<vmem>>, vector<128x128xbf16>
    %cst = arith.constant dense<0.000000e+00> : vector<16x128xf32>
    %2 = tpu.matmul %0, %1, %cst {dimension_numbers = #tpu.dot_dimension_numbers<[1], [0], [0], [1], [0, 0, 1, 1], [], []>} : vector<16x128xbf16>, vector<128x128xbf16>, vector<16x128xf32> -> vector<16x128xf32>
    %c0_3 = arith.constant 0 : index
    %c0_4 = arith.constant 0 : index
    %3 = vector.load %arg3[%c0_3, %c0_4] : memref<1x128xf32, #tpu.memory_space<vmem>>, vector<1x128xf32>
    %4 = vector.broadcast %3 : vector<1x128xf32> to vector<16x128xf32>
    %5 = arith.addf %2, %4 : vector<16x128xf32>
    %6 = arith.truncf %5 : vector<16x128xf32> to vector<16x128xbf16>
    %7 = arith.mulf %6, %6 : vector<16x128xbf16>
    %8 = arith.mulf %6, %7 : vector<16x128xbf16>
    %cst_5 = arith.constant 4.467770e-02 : bf16
    %9 = vector.broadcast %cst_5 : bf16 to vector<16x128xbf16>
    %10 = arith.mulf %9, %8 : vector<16x128xbf16>
    %11 = arith.addf %6, %10 : vector<16x128xbf16>
    %cst_6 = arith.constant 7.968750e-01 : bf16
    %12 = vector.broadcast %cst_6 : bf16 to vector<16x128xbf16>
    %13 = arith.mulf %12, %11 : vector<16x128xbf16>
    %14 = math.tanh %13 : vector<16x128xbf16>
    %cst_7 = arith.constant 1.000000e+00 : bf16
    %15 = vector.broadcast %cst_7 : bf16 to vector<16x128xbf16>
    %16 = arith.addf %15, %14 : vector<16x128xbf16>
    %cst_8 = arith.constant 5.000000e-01 : bf16
    %17 = vector.broadcast %cst_8 : bf16 to vector<16x128xbf16>
    %18 = arith.mulf %17, %16 : vector<16x128xbf16>
    %19 = arith.mulf %6, %18 : vector<16x128xbf16>
    %c0_9 = arith.constant 0 : index
    %c0_10 = arith.constant 0 : index
    %20 = vector.load %arg4[%c0_9, %c0_10] : memref<128x128xbf16, #tpu.memory_space<vmem>>, vector<128x128xbf16>
    %cst_11 = arith.constant dense<0.000000e+00> : vector<16x128xf32>
    %21 = tpu.matmul %19, %20, %cst_11 {dimension_numbers = #tpu.dot_dimension_numbers<[1], [0], [0], [1], [0, 0, 1, 1], [], []>} : vector<16x128xbf16>, vector<128x128xbf16>, vector<16x128xf32> -> vector<16x128xf32>
    %c0_12 = arith.constant 0 : index
    %c0_13 = arith.constant 0 : index
    %22 = vector.load %arg5[%c0_12, %c0_13] : memref<1x128xf32, #tpu.memory_space<vmem>>, vector<1x128xf32>
    %23 = vector.broadcast %22 : vector<1x128xf32> to vector<16x128xf32>
    %24 = arith.addf %21, %23 : vector<16x128xf32>
    %c0_14 = arith.constant 0 : index
    %c0_15 = arith.constant 0 : index
    %25 = vector.load %arg6[%c0_14, %c0_15] : memref<16x128xf32, #tpu.memory_space<vmem>>, vector<16x128xf32>
    tpu.vector_store %arg6[%c0_14, %c0_15], %24 {strides = array<i32>} : memref<16x128xf32, #tpu.memory_space<vmem>>, vector<16x128xf32>,
    return
  }
  func.func @transform_0(%arg0: i32) -> (i32, i32) {
    %c0_i32 = arith.constant 0 : i32
    %c0_i32_0 = arith.constant 0 : i32
    return %arg0, %c0_i32 : i32, i32
  }
  func.func @transform_1(%arg0: i32) -> (i32, i32) {
    %c0_i32 = arith.constant 0 : i32
    %c0_i32_0 = arith.constant 0 : i32
    %c0_i32_1 = arith.constant 0 : i32
    return %c0_i32, %c0_i32_0 : i32, i32
  }
  func.func @transform_2(%arg0: i32) -> (i32, i32) {
    %c0_i32 = arith.constant 0 : i32
    %c0_i32_0 = arith.constant 0 : i32
    %c0_i32_1 = arith.constant 0 : i32
    return %c0_i32, %c0_i32_0 : i32, i32
  }
  func.func @transform_3(%arg0: i32) -> (i32, i32) {
    %c0_i32 = arith.constant 0 : i32
    %c0_i32_0 = arith.constant 0 : i32
    %c0_i32_1 = arith.constant 0 : i32
    return %c0_i32, %c0_i32_0 : i32, i32
  }
  func.func @transform_4(%arg0: i32) -> (i32, i32) {
    %c0_i32 = arith.constant 0 : i32
    %c0_i32_0 = arith.constant 0 : i32
    %c0_i32_1 = arith.constant 0 : i32
    return %c0_i32, %c0_i32_0 : i32, i32
  }
  func.func @transform_5(%arg0: i32) -> (i32, i32) {
    %c0_i32 = arith.constant 0 : i32
    %c0_i32_0 = arith.constant 0 : i32
    return %arg0, %c0_i32 : i32, i32
  }
}

</mosaic_0001>

<llo_original>
// kernel: tpu_custom_call.1
$region0: #{tpu_custom_call.1}
  #allocation0 [shape = 'u32[]', space=smem, size = 0x4, offset = 0x4, fixed_abs, tag = 'smem constant byte address 0x4 - core index']
  #allocation1 [shape = 'u32[144,128]{1,0:T(1,128)}', space=vmem, size = 0x12000, scoped, tag = 'internal scratch']
  %s0 = inlined_call_operand.hbm [shape: bf16[16,128], index: 0, kind: input, shape index: {}]
  %s1 = inlined_call_operand.hbm [shape: bf16[128,128], index: 1, kind: input, shape index: {}]
  %s2 = inlined_call_operand.vmem [shape: f32[1,128], index: 2, kind: input, shape index: {}]
  %s3 = inlined_call_operand.hbm [shape: bf16[128,128], index: 3, kind: input, shape index: {}]
  %s4 = inlined_call_operand.vmem [shape: f32[1,128], index: 4, kind: input, shape index: {}]
  %s5 = inlined_call_operand.hbm [shape: f32[16,128], index: 5, kind: output, shape index: {}]
  %s6 = sld [smem:[#allocation0]]
  $region42: #{tpu_custom_call.1} parent=0
    _
  %s8 = ssub.s32 1, %s6
  %s9 = scalar_select 0, %s8, %s6
  $region1: #{tpu_custom_call.1} parent=0
    #allocation2 [shape = 'u8[4096]{0}', space=vmem, size = 0x1000, scoped, tag = 'input window, operand 0, single buffered']
    #allocation3 [shape = 's32[1]{0}', space=sflag, size = 0x4, scoped, tag = 'scoped memory for tpu_custom_call.1']
    #allocation4 [shape = 's32[1]{0}', space=sflag, size = 0x4, scoped, tag = 'scoped memory for tpu_custom_call.1']
    #allocation5 [shape = 'u8[32768]{0}', space=vmem, size = 0x8000, scoped, tag = 'input window, operand 1, single buffered']
    #allocation6 [shape = 's32[1]{0}', space=sflag, size = 0x4, scoped, tag = 'scoped memory for tpu_custom_call.1']
    #allocation7 [shape = 'u8[32768]{0}', space=vmem, size = 0x8000, scoped, tag = 'input window, operand 3, single buffered']
    #allocation8 [shape = 'u8[8192]{0}', space=vmem, size = 0x2000, scoped, tag = 'output window, operand 0, single buffered']
    %10 = vsyncpa [#allocation3], 0
    %11 = vsyncpa [#allocation6], 0
    %12 = vsyncpa [#allocation4], 0
    // Predicated region
    $region2: #{tpu_custom_call.1} parent=1 // pred_check
      _
    $region3: #{tpu_custom_call.1} parent=1 // pred_check_branch
      %14 = sbr.rel (0) target = $region5
    $region4: #{tpu_custom_call.1} parent=1 // pred_region
      %s16 = ssub.s32 128, 128
      %17 = vsyncadd [#allocation3], %s16
      %s18 = sshll.u32 [#allocation2], 4
      %s19 = int_to_ptr.vmem [resolvable:$true] %s18
      %24 = dma.hbm_to_vmem [thread:$0]  %s0, 128, %s19, [#allocation3], 64, 64, 4
    $region5: #{tpu_custom_call.1} parent=1 // pred_fallthru
      _
    // Predicated region
    $region6: #{tpu_custom_call.1} parent=1 // pred_check
      _
    $region7: #{tpu_custom_call.1} parent=1 // pred_check_branch
      %26 = sbr.rel (0) target = $region9
    $region8: #{tpu_custom_call.1} parent=1 // pred_region
      %s28 = ssub.s32 1024, 1024
      %29 = vsyncadd [#allocation6], %s28
      %s30 = sshll.u32 [#allocation5], 4
      %s31 = int_to_ptr.vmem [resolvable:$true] %s30
      %36 = dma.hbm_to_vmem [thread:$0]  %s1, 1024, %s31, [#allocation6], 64, 64, 4
    $region9: #{tpu_custom_call.1} parent=1 // pred_fallthru
      _
    // Predicated region
    $region10: #{tpu_custom_call.1} parent=1 // pred_check
      _
    $region11: #{tpu_custom_call.1} parent=1 // pred_check_branch
      %38 = sbr.rel (0) target = $region13
    $region12: #{tpu_custom_call.1} parent=1 // pred_region
      _
    $region13: #{tpu_custom_call.1} parent=1 // pred_fallthru
      _
    // Predicated region
    $region14: #{tpu_custom_call.1} parent=1 // pred_check
      _
    $region15: #{tpu_custom_call.1} parent=1 // pred_check_branch
      %40 = sbr.rel (0) target = $region17
    $region16: #{tpu_custom_call.1} parent=1 // pred_region
      %s42 = ssub.s32 1024, 1024
      %43 = vsyncadd [#allocation6], %s42
      %s44 = sshll.u32 [#allocation7], 4
      %s45 = int_to_ptr.vmem [resolvable:$true] %s44
      %50 = dma.hbm_to_vmem [thread:$0]  %s3, 1024, %s45, [#allocation6], 64, 64, 4
    $region17: #{tpu_custom_call.1} parent=1 // pred_fallthru
      _
    // Predicated region
    $region18: #{tpu_custom_call.1} parent=1 // pred_check
      _
    $region19: #{tpu_custom_call.1} parent=1 // pred_check_branch
      %52 = sbr.rel (0) target = $region21
    $region20: #{tpu_custom_call.1} parent=1 // pred_region
      _
    $region21: #{tpu_custom_call.1} parent=1 // pred_fallthru
      _
    // Predicated region
    $region22: #{tpu_custom_call.1} parent=1 // pred_check
      _
    $region23: #{tpu_custom_call.1} parent=1 // pred_check_branch
      %54 = sbr.rel (0) target = $region25
    $region24: #{tpu_custom_call.1} parent=1 // pred_region
      %55 = dma.done [#allocation3], 128
    $region25: #{tpu_custom_call.1} parent=1 // pred_fallthru
      _
    // Predicated region
    $region26: #{tpu_custom_call.1} parent=1 // pred_check
      _
    $region27: #{tpu_custom_call.1} parent=1 // pred_check_branch
      %57 = sbr.rel (0) target = $region29
    $region28: #{tpu_custom_call.1} parent=1 // pred_region
      %58 = dma.done [#allocation6], 1024
    $region29: #{tpu_custom_call.1} parent=1 // pred_fallthru
      _
    // Predicated region
    $region30: #{tpu_custom_call.1} parent=1 // pred_check
      _
    $region31: #{tpu_custom_call.1} parent=1 // pred_check_branch
      %60 = sbr.rel (0) target = $region33
    $region32: #{tpu_custom_call.1} parent=1 // pred_region
      %61 = dma.done [#allocation6], 1024
    $region33: #{tpu_custom_call.1} parent=1 // pred_fallthru
      _
    %v67 = vld [vmem:[#allocation2] sm:$0xf]
    %v68 = vld [vmem:[#allocation2 + $0x4] sm:$0xf]
    %v69 = vld [vmem:[#allocation5] sm:$0xf]
    %v70 = vld [vmem:[#allocation5 + $0x4] sm:$0xf]
    %v71 = vld [vmem:[#allocation5 + $0x8] sm:$0xf]
    %v72 = vld [vmem:[#allocation5 + $0xc] sm:$0xf]
    %v73 = vld [vmem:[#allocation5 + $0x10] sm:$0xf]
    %v74 = vld [vmem:[#allocation5 + $0x14] sm:$0xf]
    %v75 = vld [vmem:[#allocation5 + $0x18] sm:$0xf]
    %v76 = vld [vmem:[#allocation5 + $0x1c] sm:$0xf]
    %v77 = vld [vmem:[#allocation5 + $0x20] sm:$0xf]
    %v78 = vld [vmem:[#allocation5 + $0x24] sm:$0xf]
    %v79 = vld [vmem:[#allocation5 + $0x28] sm:$0xf]
    %v80 = vld [vmem:[#allocation5 + $0x2c] sm:$0xf]
    %v81 = vld [vmem:[#allocation5 + $0x30] sm:$0xf]
    %v82 = vld [vmem:[#allocation5 + $0x34] sm:$0xf]
    %v83 = vld [vmem:[#allocation5 + $0x38] sm:$0xf]
    %v84 = vld [vmem:[#allocation5 + $0x3c] sm:$0xf]
    %v85 = vld [vmem:[%s2] sm:$0x1]
    %v87 = vlaneseq
    %v88 = vshrl.u32 %v87, 7
    %v89 = vsub.s32 0, %v88
    %v90 = vrot.slane %v85, %v89
    %v94 = vunpack.c.l.b16 %v67
    %v95 = vunpack.c.l.b16 %v68
    %v96 = vpack.c.b16 %v95, %v94
    %v114 = vunpack.c.l.b16 %v69
    %v115 = vunpack.c.l.b16 %v70
    %v116 = vunpack.c.l.b16 %v71
    %v117 = vunpack.c.l.b16 %v72
    %v118 = vunpack.c.l.b16 %v73
    %v119 = vunpack.c.l.b16 %v74
    %v120 = vunpack.c.l.b16 %v75
    %v121 = vunpack.c.l.b16 %v76
    %v122 = vunpack.c.l.b16 %v77
    %v123 = vunpack.c.l.b16 %v78
    %v124 = vunpack.c.l.b16 %v79
    %v125 = vunpack.c.l.b16 %v80
    %v126 = vunpack.c.l.b16 %v81
    %v127 = vunpack.c.l.b16 %v82
    %v128 = vunpack.c.l.b16 %v83
    %v129 = vunpack.c.l.b16 %v84
    %v130 = vpack.c.b16 %v115, %v114
    %v131 = vpack.c.b16 %v117, %v116
    %v132 = vpack.c.b16 %v119, %v118
    %v133 = vpack.c.b16 %v121, %v120
    %v134 = vpack.c.b16 %v123, %v122
    %v135 = vpack.c.b16 %v125, %v124
    %v136 = vpack.c.b16 %v127, %v126
    %v137 = vpack.c.b16 %v129, %v128
    %146 = vmatprep.subr.bf16.mxu0 0
    %147 = vmatpush1.bf16.msra.mxu0 %v130
    %148 = vmatprep.subr.bf16.mxu0 0
    %149 = vmatpush1.bf16.msra.mxu0 %v131
    %150 = vmatprep.subr.bf16.mxu0 0
    %151 = vmatpush1.bf16.msra.mxu0 %v132
    %152 = vmatprep.subr.bf16.mxu0 0
    %153 = vmatpush1.bf16.msra.mxu0 %v133
    %154 = vmatprep.subr.bf16.mxu0 0
    %155 = vmatpush1.bf16.msra.mxu0 %v134
    %156 = vmatprep.subr.bf16.mxu0 0
    %157 = vmatpush1.bf16.msra.mxu0 %v135
    %158 = vmatprep.subr.bf16.mxu0 0
    %159 = vmatpush1.bf16.msra.mxu0 %v136
    %160 = vmatprep.subr.bf16.mxu0 0
    %161 = vmatpush1.bf16.msra.mxu0 %v137
    %162 = vmatprep.subr.bf16.mxu0 0
    %163 = vmatpush1.bf16.msra.mxu0 0
    %164 = vmatprep.subr.bf16.mxu0 0
    %165 = vmatpush1.bf16.msra.mxu0 0
    %166 = vmatprep.subr.bf16.mxu0 0
    %167 = vmatpush1.bf16.msra.mxu0 0
    %168 = vmatprep.subr.bf16.mxu0 0
    %169 = vmatpush1.bf16.msra.mxu0 0
    %170 = vmatprep.subr.bf16.mxu0 0
    %171 = vmatpush1.bf16.msra.mxu0 0
    %172 = vmatprep.subr.bf16.mxu0 0
    %173 = vmatpush1.bf16.msra.mxu0 0
    %174 = vmatprep.subr.bf16.mxu0 0
    %175 = vmatpush1.bf16.msra.mxu0 0
    %176 = vmatprep.subr.bf16.mxu0 0
    %177 = vmatpush1.bf16.msra.mxu0 0
    %178 = vmatprep.mubr.bf16.mxu0 0
    %179 = vmatmul.mubr.bf16.gmra.mrb[0].mxu0 %v96
    %v180 = vpop.f32.mrb[0].mxu0
    %v181 = vadd.f32 %v90, %v180
    %v182 = vpop.f32.mrb[0].mxu0
    %v183 = vpop.f32.mrb[0].mxu0
    %v184 = vadd.f32 %v90, %v183
    %v185 = vpop.f32.mrb[0].mxu0
    %186 = vdwg.mxu0
    %v187 = vpack.c.bf16 %v184, %v181
    %v188 = vmul.bf16 %v187, %v187
    %v189 = vmul.bf16 %v187, %v188
    %v190 = vmul.bf16 %v189, 1027030327
    %v191 = vadd.bf16 %v187, %v190
    %v192 = vmul.bf16 %v191, 1061961548
    %v193 = vtanh.bf16.pop %v192
    %v194 = vadd.bf16 %v193, 1065369472
    %v195 = vmul.bf16 %v194, 1056980736
    %v196 = vmul.bf16 %v187, %v195
    %v197 = vld [vmem:[#allocation7] sm:$0xf]
    %v198 = vld [vmem:[#allocation7 + $0x4] sm:$0xf]
    %v199 = vld [vmem:[#allocation7 + $0x8] sm:$0xf]
    %v200 = vld [vmem:[#allocation7 + $0xc] sm:$0xf]
    %v201 = vld [vmem:[#allocation7 + $0x10] sm:$0xf]
    %v202 = vld [vmem:[#allocation7 + $0x14] sm:$0xf]
    %v203 = vld [vmem:[#allocation7 + $0x18] sm:$0xf]
    %v204 = vld [vmem:[#allocation7 + $0x1c] sm:$0xf]
    %v205 = vld [vmem:[#allocation7 + $0x20] sm:$0xf]
    %v206 = vld [vmem:[#allocation7 + $0x24] sm:$0xf]
    %v207 = vld [vmem:[#allocation7 + $0x28] sm:$0xf]
    %v208 = vld [vmem:[#allocation7 + $0x2c] sm:$0xf]
    %v209 = vld [vmem:[#allocation7 + $0x30] sm:$0xf]
    %v210 = vld [vmem:[#allocation7 + $0x34] sm:$0xf]
    %v211 = vld [vmem:[#allocation7 + $0x38] sm:$0xf]
    %v212 = vld [vmem:[#allocation7 + $0x3c] sm:$0xf]
    %v213 = vld [vmem:[%s4] sm:$0x1]
    %v215 = vlaneseq
    %v216 = vshrl.u32 %v215, 7
    %v217 = vsub.s32 0, %v216
    %v218 = vrot.slane %v213, %v217
    %v236 = vunpack.c.l.b16 %v197
    %v237 = vunpack.c.l.b16 %v198
    %v238 = vunpack.c.l.b16 %v199
    %v239 = vunpack.c.l.b16 %v200
    %v240 = vunpack.c.l.b16 %v201
    %v241 = vunpack.c.l.b16 %v202
    %v242 = vunpack.c.l.b16 %v203
    %v243 = vunpack.c.l.b16 %v204
    %v244 = vunpack.c.l.b16 %v205
    %v245 = vunpack.c.l.b16 %v206
    %v246 = vunpack.c.l.b16 %v207
    %v247 = vunpack.c.l.b16 %v208
    %v248 = vunpack.c.l.b16 %v209
    %v249 = vunpack.c.l.b16 %v210
    %v250 = vunpack.c.l.b16 %v211
    %v251 = vunpack.c.l.b16 %v212
    %v252 = vpack.c.b16 %v237, %v236
    %v253 = vpack.c.b16 %v239, %v238
    %v254 = vpack.c.b16 %v241, %v240
    %v255 = vpack.c.b16 %v243, %v242
    %v256 = vpack.c.b16 %v245, %v244
    %v257 = vpack.c.b16 %v247, %v246
    %v258 = vpack.c.b16 %v249, %v248
    %v259 = vpack.c.b16 %v251, %v250
    %268 = vmatprep.subr.bf16.mxu0 0
    %269 = vmatpush1.bf16.msra.mxu0 %v252
    %270 = vmatprep.subr.bf16.mxu0 0
    %271 = vmatpush1.bf16.msra.mxu0 %v253
    %272 = vmatprep.subr.bf16.mxu0 0
    %273 = vmatpush1.bf16.msra.mxu0 %v254
    %274 = vmatprep.subr.bf16.mxu0 0
    %275 = vmatpush1.bf16.msra.mxu0 %v255
    %276 = vmatprep.subr.bf16.mxu0 0
    %277 = vmatpush1.bf16.msra.mxu0 %v256
    %278 = vmatprep.subr.bf16.mxu0 0
    %279 = vmatpush1.bf16.msra.mxu0 %v257
    %280 = vmatprep.subr.bf16.mxu0 0
    %281 = vmatpush1.bf16.msra.mxu0 %v258
    %282 = vmatprep.subr.bf16.mxu0 0
    %283 = vmatpush1.bf16.msra.mxu0 %v259
    %284 = vmatprep.subr.bf16.mxu0 0
    %285 = vmatpush1.bf16.msra.mxu0 0
    %286 = vmatprep.subr.bf16.mxu0 0
    %287 = vmatpush1.bf16.msra.mxu0 0
    %288 = vmatprep.subr.bf16.mxu0 0
    %289 = vmatpush1.bf16.msra.mxu0 0
    %290 = vmatprep.subr.bf16.mxu0 0
    %291 = vmatpush1.bf16.msra.mxu0 0
    %292 = vmatprep.subr.bf16.mxu0 0
    %293 = vmatpush1.bf16.msra.mxu0 0
    %294 = vmatprep.subr.bf16.mxu0 0
    %295 = vmatpush1.bf16.msra.mxu0 0
    %296 = vmatprep.subr.bf16.mxu0 0
    %297 = vmatpush1.bf16.msra.mxu0 0
    %298 = vmatprep.subr.bf16.mxu0 0
    %299 = vmatpush1.bf16.msra.mxu0 0
    %300 = vmatprep.mubr.bf16.mxu0 0
    %301 = vmatmul.mubr.bf16.gmra.mrb[0].mxu0 %v196
    %v302 = vpop.f32.mrb[0].mxu0
    %v303 = vadd.f32 %v218, %v302
    %v304 = vpop.f32.mrb[0].mxu0
    %v305 = vpop.f32.mrb[0].mxu0
    %v306 = vadd.f32 %v218, %v305
    %v307 = vpop.f32.mrb[0].mxu0
    %308 = vdwg.mxu0
    %309 = vst [vmem:[#allocation8] sm:$0xff] %v303
    %310 = vst [vmem:[#allocation8 + $0x8] sm:$0xff] %v306
    // Predicated region
    $region34: #{tpu_custom_call.1} parent=1 // pred_check
      _
    $region35: #{tpu_custom_call.1} parent=1 // pred_check_branch
      %312 = sbr.rel (0) target = $region37
    $region36: #{tpu_custom_call.1} parent=1 // pred_region
      %s314 = ssub.s32 256, 256
      %315 = vsyncadd [#allocation4], %s314
      %s316 = sshll.u32 [#allocation8], 4
      %s317 = int_to_ptr.vmem [resolvable:$true] %s316
      %322 = dma.vmem_to_hbm [thread:$0]  %s317, 256, %s5, [#allocation4], 128, 128, 8
    $region37: #{tpu_custom_call.1} parent=1 // pred_fallthru
      _
    // Predicated region
    $region38: #{tpu_custom_call.1} parent=1 // pred_check
      _
    $region39: #{tpu_custom_call.1} parent=1 // pred_check_branch
      %324 = sbr.rel (0) target = $region41
    $region40: #{tpu_custom_call.1} parent=1 // pred_region
      %325 = dma.done [#allocation4], 256
    $region41: #{tpu_custom_call.1} parent=1 // pred_fallthru
      _
    %326 = vsyncpa [#allocation3], 1
    %327 = vsyncpa [#allocation6], 1
    %328 = vsyncpa [#allocation4], 1

// kernel: tpu_custom_call.1
$region0: #{tpu_custom_call.1}
  #allocation0 [shape = 'u32[]', space=smem, size = 0x4, offset = 0x4, fixed_abs, tag = 'smem constant byte address 0x4 - core index']
  #allocation1 [shape = 'u32[144,128]{1,0:T(1,128)}', space=vmem, size = 0x12000, scoped, tag = 'internal scratch']
  %s0 = inlined_call_operand.hbm [shape: bf16[16,128], index: 0, kind: input, shape index: {}]
  %s1 = inlined_call_operand.hbm [shape: bf16[128,128], index: 1, kind: input, shape index: {}]
  %s2 = inlined_call_operand.vmem [shape: f32[1,128], index: 2, kind: input, shape index: {}]
  %s3 = inlined_call_operand.hbm [shape: bf16[128,128], index: 3, kind: input, shape index: {}]
  %s4 = inlined_call_operand.vmem [shape: f32[1,128], index: 4, kind: input, shape index: {}]
  %s5 = inlined_call_operand.hbm [shape: f32[16,128], index: 5, kind: output, shape index: {}]
  %s6 = sld [smem:[#allocation0]]
  $region42: #{tpu_custom_call.1} parent=0
    _
  %s8 = ssub.s32 1, %s6
  %s9 = scalar_select 0, %s8, %s6
  $region1: #{tpu_custom_call.1} parent=0
    #allocation2 [shape = 'u8[4096]{0}', space=vmem, size = 0x1000, scoped, tag = 'input window, operand 0, single buffered']
    #allocation3 [shape = 's32[1]{0}', space=sflag, size = 0x4, scoped, tag = 'scoped memory for tpu_custom_call.1']
    #allocation4 [shape = 's32[1]{0}', space=sflag, size = 0x4, scoped, tag = 'scoped memory for tpu_custom_call.1']
    #allocation5 [shape = 'u8[32768]{0}', space=vmem, size = 0x8000, scoped, tag = 'input window, operand 1, single buffered']
    #allocation6 [shape = 's32[1]{0}', space=sflag, size = 0x4, scoped, tag = 'scoped memory for tpu_custom_call.1']
    #allocation7 [shape = 'u8[32768]{0}', space=vmem, size = 0x8000, scoped, tag = 'input window, operand 3, single buffered']
    #allocation8 [shape = 'u8[8192]{0}', space=vmem, size = 0x2000, scoped, tag = 'output window, operand 0, single buffered']
    %10 = vsyncpa [#allocation3], 0
    %11 = vsyncpa [#allocation6], 0
    %12 = vsyncpa [#allocation4], 0
    // Predicated region
    $region2: #{tpu_custom_call.1} parent=1 // pred_check
      _
    $region3: #{tpu_custom_call.1} parent=1 // pred_check_branch
      %14 = sbr.rel (0) target = $region5
    $region4: #{tpu_custom_call.1} parent=1 // pred_region
      %s16 = ssub.s32 128, 128
      %17 = vsyncadd [#allocation3], %s16
      %s18 = sshll.u32 [#allocation2], 4
      %s19 = int_to_ptr.vmem [resolvable:$true] %s18
      %24 = dma.hbm_to_vmem [thread:$0]  %s0, 128, %s19, [#allocation3], 64, 64, 4
    $region5: #{tpu_custom_call.1} parent=1 // pred_fallthru
      _
    // Predicated region
    $region6: #{tpu_custom_call.1} parent=1 // pred_check
      _
    $region7: #{tpu_custom_call.1} parent=1 // pred_check_branch
      %26 = sbr.rel (0) target = $region9
    $region8: #{tpu_custom_call.1} parent=1 // pred_region
      %s28 = ssub.s32 1024, 1024
      %29 = vsyncadd [#allocation6], %s28
      %s30 = sshll.u32 [#allocation5], 4
      %s31 = int_to_ptr.vmem [resolvable:$true] %s30
      %36 = dma.hbm_to_vmem [thread:$0]  %s1, 1024, %s31, [#allocation6], 64, 64, 4
    $region9: #{tpu_custom_call.1} parent=1 // pred_fallthru
      _
    // Predicated region
    $region10: #{tpu_custom_call.1} parent=1 // pred_check
      _
    $region11: #{tpu_custom_call.1} parent=1 // pred_check_branch
      %38 = sbr.rel (0) target = $region13
    $region12: #{tpu_custom_call.1} parent=1 // pred_region
      _
    $region13: #{tpu_custom_call.1} parent=1 // pred_fallthru
      _
    // Predicated region
    $region14: #{tpu_custom_call.1} parent=1 // pred_check
      _
    $region15: #{tpu_custom_call.1} parent=1 // pred_check_branch
      %40 = sbr.rel (0) target = $region17
    $region16: #{tpu_custom_call.1} parent=1 // pred_region
      %s42 = ssub.s32 1024, 1024
      %43 = vsyncadd [#allocation6], %s42
      %s44 = sshll.u32 [#allocation7], 4
      %s45 = int_to_ptr.vmem [resolvable:$true] %s44
      %50 = dma.hbm_to_vmem [thread:$0]  %s3, 1024, %s45, [#allocation6], 64, 64, 4
    $region17: #{tpu_custom_call.1} parent=1 // pred_fallthru
      _
    // Predicated region
    $region18: #{tpu_custom_call.1} parent=1 // pred_check
      _
    $region19: #{tpu_custom_call.1} parent=1 // pred_check_branch
      %52 = sbr.rel (0) target = $region21
    $region20: #{tpu_custom_call.1} parent=1 // pred_region
      _
    $region21: #{tpu_custom_call.1} parent=1 // pred_fallthru
      _
    // Predicated region
    $region22: #{tpu_custom_call.1} parent=1 // pred_check
      _
    $region23: #{tpu_custom_call.1} parent=1 // pred_check_branch
      %54 = sbr.rel (0) target = $region25
    $region24: #{tpu_custom_call.1} parent=1 // pred_region
      %55 = dma.done [#allocation3], 128
    $region25: #{tpu_custom_call.1} parent=1 // pred_fallthru
      _
    // Predicated region
    $region26: #{tpu_custom_call.1} parent=1 // pred_check
      _
    $region27: #{tpu_custom_call.1} parent=1 // pred_check_branch
      %57 = sbr.rel (0) target = $region29
    $region28: #{tpu_custom_call.1} parent=1 // pred_region
      %58 = dma.done [#allocation6], 1024
    $region29: #{tpu_custom_call.1} parent=1 // pred_fallthru
      _
    // Predicated region
    $region30: #{tpu_custom_call.1} parent=1 // pred_check
      _
    $region31: #{tpu_custom_call.1} parent=1 // pred_check_branch
      %60 = sbr.rel (0) target = $region33
    $region32: #{tpu_custom_call.1} parent=1 // pred_region
      %61 = dma.done [#allocation6], 1024
    $region33: #{tpu_custom_call.1} parent=1 // pred_fallthru
      _
    %v67 = vld [vmem:[#allocation2] sm:$0xf]
    %v68 = vld [vmem:[#allocation2 + $0x4] sm:$0xf]
    %v69 = vld [vmem:[#allocation5] sm:$0xf]
    %v70 = vld [vmem:[#allocation5 + $0x4] sm:$0xf]
    %v71 = vld [vmem:[#allocation5 + $0x8] sm:$0xf]
    %v72 = vld [vmem:[#allocation5 + $0xc] sm:$0xf]
    %v73 = vld [vmem:[#allocation5 + $0x10] sm:$0xf]
    %v74 = vld [vmem:[#allocation5 + $0x14] sm:$0xf]
    %v75 = vld [vmem:[#allocation5 + $0x18] sm:$0xf]
    %v76 = vld [vmem:[#allocation5 + $0x1c] sm:$0xf]
    %v77 = vld [vmem:[#allocation5 + $0x20] sm:$0xf]
    %v78 = vld [vmem:[#allocation5 + $0x24] sm:$0xf]
    %v79 = vld [vmem:[#allocation5 + $0x28] sm:$0xf]
    %v80 = vld [vmem:[#allocation5 + $0x2c] sm:$0xf]
    %v81 = vld [vmem:[#allocation5 + $0x30] sm:$0xf]
    %v82 = vld [vmem:[#allocation5 + $0x34] sm:$0xf]
    %v83 = vld [vmem:[#allocation5 + $0x38] sm:$0xf]
    %v84 = vld [vmem:[#allocation5 + $0x3c] sm:$0xf]
    %v85 = vld [vmem:[%s2] sm:$0x1]
    %v87 = vlaneseq
    %v88 = vshrl.u32 %v87, 7
    %v89 = vsub.s32 0, %v88
    %v90 = vrot.slane %v85, %v89
    %v94 = vunpack.c.l.b16 %v67
    %v95 = vunpack.c.l.b16 %v68
    %v96 = vpack.c.b16 %v95, %v94
    %v114 = vunpack.c.l.b16 %v69
    %v115 = vunpack.c.l.b16 %v70
    %v116 = vunpack.c.l.b16 %v71
    %v117 = vunpack.c.l.b16 %v72
    %v118 = vunpack.c.l.b16 %v73
    %v119 = vunpack.c.l.b16 %v74
    %v120 = vunpack.c.l.b16 %v75
    %v121 = vunpack.c.l.b16 %v76
    %v122 = vunpack.c.l.b16 %v77
    %v123 = vunpack.c.l.b16 %v78
    %v124 = vunpack.c.l.b16 %v79
    %v125 = vunpack.c.l.b16 %v80
    %v126 = vunpack.c.l.b16 %v81
    %v127 = vunpack.c.l.b16 %v82
    %v128 = vunpack.c.l.b16 %v83
    %v129 = vunpack.c.l.b16 %v84
    %v130 = vpack.c.b16 %v115, %v114
    %v131 = vpack.c.b16 %v117, %v116
    %v132 = vpack.c.b16 %v119, %v118
    %v133 = vpack.c.b16 %v121, %v120
    %v134 = vpack.c.b16 %v123, %v122
    %v135 = vpack.c.b16 %v125, %v124
    %v136 = vpack.c.b16 %v127, %v126
    %v137 = vpack.c.b16 %v129, %v128
    %146 = vmatprep.subr.bf16.mxu0 0
    %147 = vmatpush1.bf16.msra.mxu0 %v130
    %148 = vmatprep.subr.bf16.mxu0 0
    %149 = vmatpush1.bf16.msra.mxu0 %v131
    %150 = vmatprep.subr.bf16.mxu0 0
    %151 = vmatpush1.bf16.msra.mxu0 %v132
    %152 = vmatprep.subr.bf16.mxu0 0
    %153 = vmatpush1.bf16.msra.mxu0 %v133
    %154 = vmatprep.subr.bf16.mxu0 0
    %155 = vmatpush1.bf16.msra.mxu0 %v134
    %156 = vmatprep.subr.bf16.mxu0 0
    %157 = vmatpush1.bf16.msra.mxu0 %v135
    %158 = vmatprep.subr.bf16.mxu0 0
    %159 = vmatpush1.bf16.msra.mxu0 %v136
    %160 = vmatprep.subr.bf16.mxu0 0
    %161 = vmatpush1.bf16.msra.mxu0 %v137
    %162 = vmatprep.subr.bf16.mxu0 0
    %163 = vmatpush1.bf16.msra.mxu0 0
    %164 = vmatprep.subr.bf16.mxu0 0
    %165 = vmatpush1.bf16.msra.mxu0 0
    %166 = vmatprep.subr.bf16.mxu0 0
    %167 = vmatpush1.bf16.msra.mxu0 0
    %168 = vmatprep.subr.bf16.mxu0 0
    %169 = vmatpush1.bf16.msra.mxu0 0
    %170 = vmatprep.subr.bf16.mxu0 0
    %171 = vmatpush1.bf16.msra.mxu0 0
    %172 = vmatprep.subr.bf16.mxu0 0
    %173 = vmatpush1.bf16.msra.mxu0 0
    %174 = vmatprep.subr.bf16.mxu0 0
    %175 = vmatpush1.bf16.msra.mxu0 0
    %176 = vmatprep.subr.bf16.mxu0 0
    %177 = vmatpush1.bf16.msra.mxu0 0
    %178 = vmatprep.mubr.bf16.mxu0 0
    %179 = vmatmul.mubr.bf16.gmra.mrb[0].mxu0 %v96
    %v180 = vpop.f32.mrb[0].mxu0
    %v181 = vadd.f32 %v90, %v180
    %v182 = vpop.f32.mrb[0].mxu0
    %v183 = vpop.f32.mrb[0].mxu0
    %v184 = vadd.f32 %v90, %v183
    %v185 = vpop.f32.mrb[0].mxu0
    %186 = vdwg.mxu0
    %v187 = vpack.c.bf16 %v184, %v181
    %v188 = vmul.bf16 %v187, %v187
    %v189 = vmul.bf16 %v187, %v188
    %v190 = vmul.bf16 %v189, 1027030327
    %v191 = vadd.bf16 %v187, %v190
    %v192 = vmul.bf16 %v191, 1061961548
    %v193 = vtanh.bf16.pop %v192
    %v194 = vadd.bf16 %v193, 1065369472
    %v195 = vmul.bf16 %v194, 1056980736
    %v196 = vmul.bf16 %v187, %v195
    %v197 = vld [vmem:[#allocation7] sm:$0xf]
    %v198 = vld [vmem:[#allocation7 + $0x4] sm:$0xf]
    %v199 = vld [vmem:[#allocation7 + $0x8] sm:$0xf]
    %v200 = vld [vmem:[#allocation7 + $0xc] sm:$0xf]
    %v201 = vld [vmem:[#allocation7 + $0x10] sm:$0xf]
    %v202 = vld [vmem:[#allocation7 + $0x14] sm:$0xf]
    %v203 = vld [vmem:[#allocation7 + $0x18] sm:$0xf]
    %v204 = vld [vmem:[#allocation7 + $0x1c] sm:$0xf]
    %v205 = vld [vmem:[#allocation7 + $0x20] sm:$0xf]
    %v206 = vld [vmem:[#allocation7 + $0x24] sm:$0xf]
    %v207 = vld [vmem:[#allocation7 + $0x28] sm:$0xf]
    %v208 = vld [vmem:[#allocation7 + $0x2c] sm:$0xf]
    %v209 = vld [vmem:[#allocation7 + $0x30] sm:$0xf]
    %v210 = vld [vmem:[#allocation7 + $0x34] sm:$0xf]
    %v211 = vld [vmem:[#allocation7 + $0x38] sm:$0xf]
    %v212 = vld [vmem:[#allocation7 + $0x3c] sm:$0xf]
    %v213 = vld [vmem:[%s4] sm:$0x1]
    %v215 = vlaneseq
    %v216 = vshrl.u32 %v215, 7
    %v217 = vsub.s32 0, %v216
    %v218 = vrot.slane %v213, %v217
    %v236 = vunpack.c.l.b16 %v197
    %v237 = vunpack.c.l.b16 %v198
    %v238 = vunpack.c.l.b16 %v199
    %v239 = vunpack.c.l.b16 %v200
    %v240 = vunpack.c.l.b16 %v201
    %v241 = vunpack.c.l.b16 %v202
    %v242 = vunpack.c.l.b16 %v203
    %v243 = vunpack.c.l.b16 %v204
    %v244 = vunpack.c.l.b16 %v205
    %v245 = vunpack.c.l.b16 %v206
    %v246 = vunpack.c.l.b16 %v207
    %v247 = vunpack.c.l.b16 %v208
    %v248 = vunpack.c.l.b16 %v209
    %v249 = vunpack.c.l.b16 %v210
    %v250 = vunpack.c.l.b16 %v211
    %v251 = vunpack.c.l.b16 %v212
    %v252 = vpack.c.b16 %v237, %v236
    %v253 = vpack.c.b16 %v239, %v238
    %v254 = vpack.c.b16 %v241, %v240
    %v255 = vpack.c.b16 %v243, %v242
    %v256 = vpack.c.b16 %v245, %v244
    %v257 = vpack.c.b16 %v247, %v246
    %v258 = vpack.c.b16 %v249, %v248
    %v259 = vpack.c.b16 %v251, %v250
    %268 = vmatprep.subr.bf16.mxu0 0
    %269 = vmatpush1.bf16.msra.mxu0 %v252
    %270 = vmatprep.subr.bf16.mxu0 0
    %271 = vmatpush1.bf16.msra.mxu0 %v253
    %272 = vmatprep.subr.bf16.mxu0 0
    %273 = vmatpush1.bf16.msra.mxu0 %v254
    %274 = vmatprep.subr.bf16.mxu0 0
    %275 = vmatpush1.bf16.msra.mxu0 %v255
    %276 = vmatprep.subr.bf16.mxu0 0
    %277 = vmatpush1.bf16.msra.mxu0 %v256
    %278 = vmatprep.subr.bf16.mxu0 0
    %279 = vmatpush1.bf16.msra.mxu0 %v257
    %280 = vmatprep.subr.bf16.mxu0 0
    %281 = vmatpush1.bf16.msra.mxu0 %v258
    %282 = vmatprep.subr.bf16.mxu0 0
    %283 = vmatpush1.bf16.msra.mxu0 %v259
    %284 = vmatprep.subr.bf16.mxu0 0
    %285 = vmatpush1.bf16.msra.mxu0 0
    %286 = vmatprep.subr.bf16.mxu0 0
    %287 = vmatpush1.bf16.msra.mxu0 0
    %288 = vmatprep.subr.bf16.mxu0 0
    %289 = vmatpush1.bf16.msra.mxu0 0
    %290 = vmatprep.subr.bf16.mxu0 0
    %291 = vmatpush1.bf16.msra.mxu0 0
    %292 = vmatprep.subr.bf16.mxu0 0
    %293 = vmatpush1.bf16.msra.mxu0 0
    %294 = vmatprep.subr.bf16.mxu0 0
    %295 = vmatpush1.bf16.msra.mxu0 0
    %296 = vmatprep.subr.bf16.mxu0 0
    %297 = vmatpush1.bf16.msra.mxu0 0
    %298 = vmatprep.subr.bf16.mxu0 0
    %299 = vmatpush1.bf16.msra.mxu0 0
    %300 = vmatprep.mubr.bf16.mxu0 0
    %301 = vmatmul.mubr.bf16.gmra.mrb[0].mxu0 %v196
    %v302 = vpop.f32.mrb[0].mxu0
    %v303 = vadd.f32 %v218, %v302
    %v304 = vpop.f32.mrb[0].mxu0
    %v305 = vpop.f32.mrb[0].mxu0
    %v306 = vadd.f32 %v218, %v305
    %v307 = vpop.f32.mrb[0].mxu0
    %308 = vdwg.mxu0
    %309 = vst [vmem:[#allocation8] sm:$0xff] %v303
    %310 = vst [vmem:[#allocation8 + $0x8] sm:$0xff] %v306
    // Predicated region
    $region34: #{tpu_custom_call.1} parent=1 // pred_check
      _
    $region35: #{tpu_custom_call.1} parent=1 // pred_check_branch
      %312 = sbr.rel (0) target = $region37
    $region36: #{tpu_custom_call.1} parent=1 // pred_region
      %s314 = ssub.s32 256, 256
      %315 = vsyncadd [#allocation4], %s314
      %s316 = sshll.u32 [#allocation8], 4
      %s317 = int_to_ptr.vmem [resolvable:$true] %s316
      %322 = dma.vmem_to_hbm [thread:$0]  %s317, 256, %s5, [#allocation4], 128, 128, 8
    $region37: #{tpu_custom_call.1} parent=1 // pred_fallthru
      _
    // Predicated region
    $region38: #{tpu_custom_call.1} parent=1 // pred_check
      _
    $region39: #{tpu_custom_call.1} parent=1 // pred_check_branch
      %324 = sbr.rel (0) target = $region41
    $region40: #{tpu_custom_call.1} parent=1 // pred_region
      %325 = dma.done [#allocation4], 256
    $region41: #{tpu_custom_call.1} parent=1 // pred_fallthru
      _
    %326 = vsyncpa [#allocation3], 1
    %327 = vsyncpa [#allocation6], 1
    %328 = vsyncpa [#allocation4], 1

</llo_original>
